<compile_context>
chip_gen: v5e
topology: v5e:2x2
jax: 0.10.0
libtpu: 0.0.40
codegen_flags: <defaults>
</compile_context>

<pallas_src>
import functools

import jax
import jax.numpy as jnp
from jax.experimental import pallas as pl
from jax.experimental.pallas import tpu as pltpu


def _round_up(a, b):
    return (a + b - 1) // b * b


def _club_kernel(x_ref, y_ref, yperm_ref, w1_ref, b1_ref, w2_ref, b2_ref,
                 acc_ref, *, y_dim, logvar_off):
    """One (tile_n, ...) batch tile; accumulates per-feature partial sums of
    (positive - negative) into the resident output block."""
    t = pl.program_id(1)

    @pl.when(t == 0)
    def _init():
        acc_ref[...] = jnp.zeros_like(acc_ref)

    x = x_ref[...]

    # Fused first layer (mu | logvar branches): [tile_n, 2*h2], f32 accumulate.
    h = jnp.dot(x, w1_ref[...], preferred_element_type=jnp.float32) + b1_ref[...]
    h = jnp.maximum(h, 0.0)

    # Fused second layer; block-diagonal weight padded so the logvar block
    # starts at a 128-lane boundary -> both slices below are lane-tile aligned.
    z = jnp.dot(h, w2_ref[...], preferred_element_type=jnp.float32) + b2_ref[...]

    mu = z[:, :y_dim]
    logvar = jnp.tanh(z[:, logvar_off:logvar_off + y_dim])
    inv_var = jnp.exp(-logvar)                     # 1/exp(logvar), single EUP op

    y = y_ref[...].astype(jnp.float32)
    y_perm = yperm_ref[...].astype(jnp.float32)

    # positive - negative == (y - y_perm) * (2*mu - y - y_perm) / exp(logvar).
    # Rows past N were zero-padded in the wrapper (y == y_perm == 0), so they
    # contribute exactly 0 -- no runtime mask needed.
    diff = (y - y_perm) * (2.0 * mu - y - y_perm) * inv_var

    # Cheap cross-iteration dependency: one VPU add on a (1, 1, y_dim) slab.
    acc_ref[...] += jnp.sum(diff, axis=0, keepdims=True)[None]


def _pick_tiling(n):
    """Tile-size / VMEM-limit choice.  v7x has 64 MiB physical VMEM (cap tiles
    at 4096 rows); v5e/v6e have 128 MiB (8192 rows).  Budget uses lane-padded
    cost: a (tile_n, <=128) f32 block occupies tile_n * 128 * 4 bytes."""
    try:
        vmem_bytes = pltpu.get_tpu_info().vmem_capacity_bytes
    except Exception:
        vmem_bytes = 64 << 20  # conservative (v7x-sized) fallback
    big_vmem = vmem_bytes >= (100 << 20)
    tile_cap = 8192 if big_vmem else 4096
    tile_n = min(tile_cap, _round_up(n, 8))
    # ~10 KiB/row: 3 double-buffered 128-lane-padded inputs (~3 KiB) plus
    # h/z/diff temporaries (~4 KiB) plus headroom.
    vmem_limit = min((100 << 20) if big_vmem else (48 << 20),
                     max(32 << 20, tile_n * (10 << 10)))
    return tile_n, vmem_limit


def club_sample_forward(x, y, params, perm_key):
    """Forward pass of CLUBSample.  Returns a scalar (f32)."""
    n, x_dim = x.shape
    y_dim = y.shape[1]

    # torch.randperm equivalent.
    perm = jax.random.permutation(perm_key, n)
    y_perm = y[perm]
    # TODO(synk): at large N, pass `perm` via PrefetchScalarGridSpec and gather
    # y rows inside the kernel (manual async copies) instead of materializing
    # y_perm in HBM (~25-30% extra HBM traffic for this streaming kernel).

    (w1m, b1m, w2m, b2m, w1v, b1v, w2v, b2v) = params
    h2 = w1m.shape[1]

    # --- Fuse the two branch MLPs once, outside the kernel. -----------------
    # First layers concatenated along the output dim; second layers form a
    # block-diagonal weight whose logvar block starts at a 128-lane boundary.
    logvar_off = max(128, _round_up(y_dim, 128))
    z_width = 2 * logvar_off

    w1 = jnp.concatenate([w1m, w1v], axis=1).astype(x.dtype)       # [x_dim, 2*h2]
    b1 = jnp.concatenate([b1m, b1v], axis=1).astype(jnp.float32)   # [1, 2*h2]
    w2 = jnp.zeros((2 * h2, z_width), x.dtype)                     # [2*h2, z_width]
    w2 = w2.at[:h2, :y_dim].set(w2m.astype(x.dtype))
    w2 = w2.at[h2:, logvar_off:logvar_off + y_dim].set(w2v.astype(x.dtype))
    b2 = jnp.zeros((1, z_width), jnp.float32)
    b2 = b2.at[:, :y_dim].set(b2m.astype(jnp.float32))
    b2 = b2.at[:, logvar_off:logvar_off + y_dim].set(b2v.astype(jnp.float32))

    # --- Batch tiling: large tiles amortize the ~0.35 us/grid-step overhead. --
    tile_n, vmem_limit = _pick_tiling(n)
    tiles_total = (n + tile_n - 1) // tile_n
    # Leading "parallel" axis: on v7x (2 TensorCores) each core reduces its own
    # half of the batch into its own output block; on 1-TC chips it is just an
    # outer sequential loop with negligible overhead.
    num_splits = 2 if tiles_total >= 2 else 1
    tiles_per_split = (tiles_total + num_splits - 1) // num_splits
    padded_n = num_splits * tiles_per_split * tile_n

    if padded_n != n:
        pad = padded_n - n
        # Zero rows contribute exactly 0 to (positive - negative).
        x = jnp.pad(x, ((0, pad), (0, 0)))
        y = jnp.pad(y, ((0, pad), (0, 0)))
        y_perm = jnp.pad(y_perm, ((0, pad), (0, 0)))

    kernel = functools.partial(_club_kernel, y_dim=y_dim, logvar_off=logvar_off)

    def row_map(c, t, _tps=tiles_per_split):
        return (c * _tps + t, 0)

    vmem = pltpu.MemorySpace.VMEM
    itemsize = x.dtype.itemsize
    cost = pl.CostEstimate(
        flops=int(2 * padded_n * (x_dim * 2 * h2 + 2 * h2 * z_width)
                  + 10 * padded_n * y_dim),
        transcendentals=int(2 * padded_n * y_dim),
        bytes_accessed=int(padded_n * (x_dim + 2 * y_dim) * itemsize
                           + (w1.size + w2.size) * itemsize
                           + (b1.size + b2.size + num_splits * y_dim) * 4),
    )

    partial = pl.pallas_call(
        kernel,
        out_shape=jax.ShapeDtypeStruct((num_splits, 1, y_dim), jnp.float32),
        grid=(num_splits, tiles_per_split),
        in_specs=[
            pl.BlockSpec((tile_n, x_dim), row_map),   # x       (streamed)
            pl.BlockSpec((tile_n, y_dim), row_map),   # y       (streamed)
            pl.BlockSpec((tile_n, y_dim), row_map),   # y_perm  (streamed)
            pl.BlockSpec(memory_space=vmem),          # w1      (VMEM resident)
            pl.BlockSpec(memory_space=vmem),          # b1
            pl.BlockSpec(memory_space=vmem),          # w2
            pl.BlockSpec(memory_space=vmem),          # b2
        ],
        # Output block indexed only by the parallel axis -> stays VMEM-resident
        # across the batch ("arbitrary") axis and serves as the accumulator.
        out_specs=pl.BlockSpec((1, 1, y_dim), lambda c, t: (c, 0, 0)),
        compiler_params=pltpu.CompilerParams(
            dimension_semantics=("parallel", "arbitrary"),
            vmem_limit_bytes=int(vmem_limit)),
        cost_estimate=cost,
    )(x, y, y_perm, w1, b1, w2, b2)

    # Final cross-lane reduce + 1/(2N) scale, once, on a tiny array.
    return partial.sum() * (0.5 / n)


def init_params(key, x_dim, y_dim, hidden_size):
    """Deterministic synthetic parameters (shapes match the torch module).
    Weights are stored as [in, out] (transposed vs. torch nn.Linear)."""
    h2 = hidden_size // 2
    keys = jax.random.split(key, 8)

    def w(k, shape):
        return jax.random.normal(k, shape, jnp.float32) * 0.1

    w1m = w(keys[0], (x_dim, h2)); b1m = w(keys[1], (1, h2))
    w2m = w(keys[2], (h2, y_dim)); b2m = w(keys[3], (1, y_dim))
    w1v = w(keys[4], (x_dim, h2)); b1v = w(keys[5], (1, h2))
    w2v = w(keys[6], (h2, y_dim)); b2v = w(keys[7], (1, y_dim))
    return (w1m, b1m, w2m, b2m, w1v, b1v, w2v, b2v)


def reference_forward(x, y, params, perm_key):
    """Pure-JAX reference (unfused, mirrors the torch module; same perm key)."""
    (w1m, b1m, w2m, b2m, w1v, b1v, w2v, b2v) = params
    mu = jnp.maximum(x @ w1m + b1m, 0.0) @ w2m + b2m
    logvar = jnp.tanh(jnp.maximum(x @ w1v + b1v, 0.0) @ w2v + b2v)
    perm = jax.random.permutation(perm_key, x.shape[0])
    pos = -(mu - y) ** 2 / jnp.exp(logvar)
    neg = -(mu - y[perm]) ** 2 / jnp.exp(logvar)
    return (pos.sum(-1) - neg.sum(-1)).mean() / 2.0


if __name__ == "__main__":
    key = jax.random.PRNGKey(0)
    k_x, k_y, k_p, k_perm, k_x2, k_y2 = jax.random.split(key, 6)

    X_DIM, Y_DIM, HIDDEN = 32, 16, 32
    params = init_params(k_p, X_DIM, Y_DIM, HIDDEN)

    # Small demo shapes consistent with the module (single tile, single split).
    N = 8
    x = jax.random.normal(k_x, (N, X_DIM), jnp.float32)
    y = jax.random.normal(k_y, (N, Y_DIM), jnp.float32)
    out = club_sample_forward(x, y, params, k_perm)
    jax.block_until_ready(out)
    expected = reference_forward(x, y, params, k_perm)
    assert jnp.allclose(out, expected, rtol=1e-3, atol=1e-4), (out, expected)

    # Larger batch: exercises multi-tile streaming, the parallel split and the
    # zero-padded tail.
    N2 = 10000
    x2 = jax.random.normal(k_x2, (N2, X_DIM), jnp.float32)
    y2 = jax.random.normal(k_y2, (N2, Y_DIM), jnp.float32)
    out2 = club_sample_forward(x2, y2, params, k_perm)
    jax.block_until_ready(out2)
    expected2 = reference_forward(x2, y2, params, k_perm)
    assert jnp.allclose(out2, expected2, rtol=2e-3, atol=2e-4), (out2, expected2)

    print("KERNEL_OK")
</pallas_src>

<mosaic_0001>
module attributes {stable_mosaic.version = 11 : i64} {
  func.func @_club_kernel(%arg0: i32, %arg1: i32, %arg2: memref<8x32xf32, #tpu.memory_space<vmem>>, %arg3: memref<8x16xf32, #tpu.memory_space<vmem>>, %arg4: memref<8x16xf32, #tpu.memory_space<vmem>>, %arg5: memref<32x32xf32, #tpu.memory_space<vmem>>, %arg6: memref<1x32xf32, #tpu.memory_space<vmem>>, %arg7: memref<32x256xf32, #tpu.memory_space<vmem>>, %arg8: memref<1x256xf32, #tpu.memory_space<vmem>>, %arg9: memref<1x1x16xf32, #tpu.memory_space<vmem>>) attributes {dimension_semantics = [#tpu.dimension_semantics<parallel>, #tpu.dimension_semantics<arbitrary>], iteration_bounds = array<i64: 1, 1>, scalar_prefetch = 0 : i64, scratch_operands = 0 : i64, tpu.core_type = #tpu.core_type<tc>, window_params = [{transform_indices = @transform_0, window_bounds = array<i64: 8, 32>}, {transform_indices = @transform_1, window_bounds = array<i64: 8, 16>}, {transform_indices = @transform_2, window_bounds = array<i64: 8, 16>}, {pipeline_mode = #tpu.pipeline_mode<synchronous>, transform_indices = @transform_3, window_bounds = array<i64: 32, 32>}, {pipeline_mode = #tpu.pipeline_mode<synchronous>, transform_indices = @transform_4, window_bounds = array<i64: 1, 32>}, {pipeline_mode = #tpu.pipeline_mode<synchronous>, transform_indices = @transform_5, window_bounds = array<i64: 32, 256>}, {pipeline_mode = #tpu.pipeline_mode<synchronous>, transform_indices = @transform_6, window_bounds = array<i64: 1, 256>}, {transform_indices = @transform_7, window_bounds = array<i64: 1, 1, 16>}]} {
    %c0_i32 = arith.constant 0 : i32
    %0 = arith.cmpi eq, %arg1, %c0_i32 : i32
    %1 = arith.extui %0 : i1 to i32
    %c0_i32_0 = arith.constant 0 : i32
    %2 = arith.cmpi ne, %1, %c0_i32_0 : i32
    scf.if %2 {
      %cst_25 = arith.constant 0.000000e+00 : f32
      %37 = vector.broadcast %cst_25 : f32 to vector<1x1x16xf32>
      %c0_26 = arith.constant 0 : index
      %c0_27 = arith.constant 0 : index
      %c0_28 = arith.constant 0 : index
      %38 = vector.load %arg9[%c0_26, %c0_27, %c0_28] : memref<1x1x16xf32, #tpu.memory_space<vmem>>, vector<1x1x16xf32>
      tpu.vector_store %arg9[%c0_26, %c0_27, %c0_28], %37 {strides = array<i32>} : memref<1x1x16xf32, #tpu.memory_space<vmem>>, vector<1x1x16xf32>,
    } else {
    }
    %c0 = arith.constant 0 : index
    %c0_1 = arith.constant 0 : index
    %3 = vector.load %arg2[%c0, %c0_1] : memref<8x32xf32, #tpu.memory_space<vmem>>, vector<8x32xf32>
    %c0_2 = arith.constant 0 : index
    %c0_3 = arith.constant 0 : index
    %4 = vector.load %arg5[%c0_2, %c0_3] : memref<32x32xf32, #tpu.memory_space<vmem>>, vector<32x32xf32>
    %cst = arith.constant dense<0.000000e+00> : vector<8x32xf32>
    %5 = tpu.matmul %3, %4, %cst {dimension_numbers = #tpu.dot_dimension_numbers<[1], [0], [0], [1], [0, 0, 1, 1], [], []>} : vector<8x32xf32>, vector<32x32xf32>, vector<8x32xf32> -> vector<8x32xf32>
    %c0_4 = arith.constant 0 : index
    %c0_5 = arith.constant 0 : index
    %6 = vector.load %arg6[%c0_4, %c0_5] : memref<1x32xf32, #tpu.memory_space<vmem>>, vector<1x32xf32>
    %7 = vector.broadcast %6 : vector<1x32xf32> to vector<8x32xf32>
    %8 = arith.addf %5, %7 : vector<8x32xf32>
    %cst_6 = arith.constant 0.000000e+00 : f32
    %9 = vector.broadcast %cst_6 : f32 to vector<8x32xf32>
    %10 = arith.maximumf %8, %9 : vector<8x32xf32>
    %c0_7 = arith.constant 0 : index
    %c0_8 = arith.constant 0 : index
    %11 = vector.load %arg7[%c0_7, %c0_8] : memref<32x256xf32, #tpu.memory_space<vmem>>, vector<32x256xf32>
    %cst_9 = arith.constant dense<0.000000e+00> : vector<8x256xf32>
    %12 = tpu.matmul %10, %11, %cst_9 {dimension_numbers = #tpu.dot_dimension_numbers<[1], [0], [0], [1], [0, 0, 1, 1], [], []>} : vector<8x32xf32>, vector<32x256xf32>, vector<8x256xf32> -> vector<8x256xf32>
    %c0_10 = arith.constant 0 : index
    %c0_11 = arith.constant 0 : index
    %13 = vector.load %arg8[%c0_10, %c0_11] : memref<1x256xf32, #tpu.memory_space<vmem>>, vector<1x256xf32>
    %14 = vector.broadcast %13 : vector<1x256xf32> to vector<8x256xf32>
    %15 = arith.addf %12, %14 : vector<8x256xf32>
    %16 = vector.extract_strided_slice %15 {offsets = [0, 0], sizes = [8, 16], strides = [1, 1]} : vector<8x256xf32> to vector<8x16xf32>
    %17 = vector.extract_strided_slice %15 {offsets = [0, 128], sizes = [8, 16], strides = [1, 1]} : vector<8x256xf32> to vector<8x16xf32>
    %18 = math.tanh %17 : vector<8x16xf32>
    %cst_12 = arith.constant 0.000000e+00 : f32
    %19 = vector.broadcast %cst_12 : f32 to vector<8x16xf32>
    %20 = arith.subf %19, %18 : vector<8x16xf32>
    %21 = math.exp %20 : vector<8x16xf32>
    %c0_13 = arith.constant 0 : index
    %c0_14 = arith.constant 0 : index
    %22 = vector.load %arg3[%c0_13, %c0_14] : memref<8x16xf32, #tpu.memory_space<vmem>>, vector<8x16xf32>
    %c0_15 = arith.constant 0 : index
    %c0_16 = arith.constant 0 : index
    %23 = vector.load %arg4[%c0_15, %c0_16] : memref<8x16xf32, #tpu.memory_space<vmem>>, vector<8x16xf32>
    %24 = arith.subf %22, %23 : vector<8x16xf32>
    %cst_17 = arith.constant 2.000000e+00 : f32
    %25 = vector.broadcast %cst_17 : f32 to vector<8x16xf32>
    %26 = arith.mulf %25, %16 : vector<8x16xf32>
    %27 = arith.subf %26, %22 : vector<8x16xf32>
    %28 = arith.subf %27, %23 : vector<8x16xf32>
    %29 = arith.mulf %24, %28 : vector<8x16xf32>
    %30 = arith.mulf %29, %21 : vector<8x16xf32>
    %c0_18 = arith.constant 0 : index
    %c0_19 = arith.constant 0 : index
    %c0_20 = arith.constant 0 : index
    %31 = vector.load %arg9[%c0_18, %c0_19, %c0_20] : memref<1x1x16xf32, #tpu.memory_space<vmem>>, vector<1x1x16xf32>
    %cst_21 = arith.constant dense<0.000000e+00> : vector<16xf32>
    %32 = vector.multi_reduction <add>, %30, %cst_21 [0] : vector<8x16xf32> to vector<16xf32>
    %33 = vector.shape_cast %32 : vector<16xf32> to vector<1x16xf32>
    %34 = vector.shape_cast %33 : vector<1x16xf32> to vector<1x1x16xf32>
    %35 = arith.addf %31, %34 : vector<1x1x16xf32>
    %c0_22 = arith.constant 0 : index
    %c0_23 = arith.constant 0 : index
    %c0_24 = arith.constant 0 : index
    %36 = vector.load %arg9[%c0_22, %c0_23, %c0_24] : memref<1x1x16xf32, #tpu.memory_space<vmem>>, vector<1x1x16xf32>
    tpu.vector_store %arg9[%c0_22, %c0_23, %c0_24], %35 {strides = array<i32>} : memref<1x1x16xf32, #tpu.memory_space<vmem>>, vector<1x1x16xf32>,
    return
  }
  func.func @transform_0(%arg0: i32, %arg1: i32) -> (i32, i32) {
    %c1_i32 = arith.constant 1 : i32
    %0 = arith.muli %arg0, %c1_i32 : i32
    %1 = arith.addi %0, %arg1 : i32
    %c0_i32 = arith.constant 0 : i32
    %c0_i32_0 = arith.constant 0 : i32
    return %1, %c0_i32 : i32, i32
  }
  func.func @transform_1(%arg0: i32, %arg1: i32) -> (i32, i32) {
    %c1_i32 = arith.constant 1 : i32
    %0 = arith.muli %arg0, %c1_i32 : i32
    %1 = arith.addi %0, %arg1 : i32
    %c0_i32 = arith.constant 0 : i32
    %c0_i32_0 = arith.constant 0 : i32
    return %1, %c0_i32 : i32, i32
  }
  func.func @transform_2(%arg0: i32, %arg1: i32) -> (i32, i32) {
    %c1_i32 = arith.constant 1 : i32
    %0 = arith.muli %arg0, %c1_i32 : i32
    %1 = arith.addi %0, %arg1 : i32
    %c0_i32 = arith.constant 0 : i32
    %c0_i32_0 = arith.constant 0 : i32
    return %1, %c0_i32 : i32, i32
  }
  func.func @transform_3(%arg0: i32, %arg1: i32) -> (i32, i32) {
    %c0_i32 = arith.constant 0 : i32
    %c0_i32_0 = arith.constant 0 : i32
    %c0_i32_1 = arith.constant 0 : i32
    return %c0_i32, %c0_i32_0 : i32, i32
  }
  func.func @transform_4(%arg0: i32, %arg1: i32) -> (i32, i32) {
    %c0_i32 = arith.constant 0 : i32
    %c0_i32_0 = arith.constant 0 : i32
    %c0_i32_1 = arith.constant 0 : i32
    return %c0_i32, %c0_i32_0 : i32, i32
  }
  func.func @transform_5(%arg0: i32, %arg1: i32) -> (i32, i32) {
    %c0_i32 = arith.constant 0 : i32
    %c0_i32_0 = arith.constant 0 : i32
    %c0_i32_1 = arith.constant 0 : i32
    return %c0_i32, %c0_i32_0 : i32, i32
  }
  func.func @transform_6(%arg0: i32, %arg1: i32) -> (i32, i32) {
    %c0_i32 = arith.constant 0 : i32
    %c0_i32_0 = arith.constant 0 : i32
    %c0_i32_1 = arith.constant 0 : i32
    return %c0_i32, %c0_i32_0 : i32, i32
  }
  func.func @transform_7(%arg0: i32, %arg1: i32) -> (i32, i32, i32) {
    %c0_i32 = arith.constant 0 : i32
    %c0_i32_0 = arith.constant 0 : i32
    %c0_i32_1 = arith.constant 0 : i32
    return %arg0, %c0_i32, %c0_i32_0 : i32, i32, i32
  }
}

</mosaic_0001>

<llo_original>
// kernel: tpu_custom_call.1
$region0: #{tpu_custom_call.1}
  #allocation0 [shape = 'u32[]', space=smem, size = 0x4, offset = 0x4, fixed_abs, tag = 'smem constant byte address 0x4 - core index']
  #allocation1 [shape = 'u32[72,128]{1,0:T(1,128)}', space=vmem, size = 0x9000, scoped, tag = 'internal scratch']
  %s0 = inlined_call_operand.hbm [shape: f32[8,32], index: 0, kind: input, shape index: {}]
  %s1 = inlined_call_operand.hbm [shape: f32[8,16], index: 1, kind: input, shape index: {}]
  %s2 = inlined_call_operand.hbm [shape: f32[8,16], index: 2, kind: input, shape index: {}]
  %s3 = inlined_call_operand.hbm [shape: f32[32,32], index: 3, kind: input, shape index: {}]
  %s4 = inlined_call_operand.vmem [shape: f32[1,32], index: 4, kind: input, shape index: {}]
  %s5 = inlined_call_operand.hbm [shape: f32[32,256], index: 5, kind: input, shape index: {}]
  %s6 = inlined_call_operand.vmem [shape: f32[1,256], index: 6, kind: input, shape index: {}]
  %s7 = inlined_call_operand.hbm [shape: f32[1,1,16], index: 7, kind: output, shape index: {}]
  %s8 = sld [smem:[#allocation0]]
  $region62: #{tpu_custom_call.1} parent=0
    _
  %s10 = ssub.s32 1, %s8
  %s11 = scalar_select 0, %s10, %s8
  $region1: #{tpu_custom_call.1} parent=0
    #allocation2 [shape = 'u8[4096]{0}', space=vmem, size = 0x1000, scoped, tag = 'input window, operand 0, single buffered']
    #allocation3 [shape = 's32[1]{0}', space=sflag, size = 0x4, scoped, tag = 'scoped memory for tpu_custom_call.1']
    #allocation4 [shape = 's32[1]{0}', space=sflag, size = 0x4, scoped, tag = 'scoped memory for tpu_custom_call.1']
    #allocation5 [shape = 'u8[4096]{0}', space=vmem, size = 0x1000, scoped, tag = 'input window, operand 1, single buffered']
    #allocation6 [shape = 's32[1]{0}', space=sflag, size = 0x4, scoped, tag = 'scoped memory for tpu_custom_call.1']
    #allocation7 [shape = 'u8[4096]{0}', space=vmem, size = 0x1000, scoped, tag = 'input window, operand 2, single buffered']
    #allocation8 [shape = 'u8[16384]{0}', space=vmem, size = 0x4000, scoped, tag = 'input window, operand 3, single buffered']
    #allocation9 [shape = 's32[1]{0}', space=sflag, size = 0x4, scoped, tag = 'scoped memory for tpu_custom_call.1']
    #allocation10 [shape = 'u8[32768]{0}', space=vmem, size = 0x8000, scoped, tag = 'input window, operand 5, single buffered']
    #allocation11 [shape = 'u8[512]{0}', space=vmem, size = 0x400, scoped, tag = 'output window, operand 0, single buffered']
    %12 = vsyncpa [#allocation3], 0
    %13 = vsyncpa [#allocation6], 0
    %14 = vsyncpa [#allocation9], 0
    %15 = vsyncpa [#allocation4], 0
    // Predicated region
    $region2: #{tpu_custom_call.1} parent=1 // pred_check
      _
    $region3: #{tpu_custom_call.1} parent=1 // pred_check_branch
      %17 = sbr.rel (0) target = $region5
    $region4: #{tpu_custom_call.1} parent=1 // pred_region
      %s18 = sadd.s32 0, 0
      %20 = vsyncadd [#allocation3], 0
      %s21 = smul.addr %s18, 8
      %s22 = scalar_lea.hbm %s0, %s21
      %s24 = sshll.u32 %s22, 4
      %s25 = int_to_ptr.hbm [resolvable:$true] %s24
      %s26 = sshll.u32 [#allocation2], 4
      %s27 = int_to_ptr.vmem [resolvable:$true] %s26
      %29 = dma.hbm_to_vmem [thread:$0]  %s25, 128, %s27, [#allocation3]
    $region5: #{tpu_custom_call.1} parent=1 // pred_fallthru
      _
    // Predicated region
    $region6: #{tpu_custom_call.1} parent=1 // pred_check
      _
    $region7: #{tpu_custom_call.1} parent=1 // pred_check_branch
      %31 = sbr.rel (0) target = $region9
    $region8: #{tpu_custom_call.1} parent=1 // pred_region
      %s32 = sadd.s32 0, 0
      %34 = vsyncadd [#allocation6], 0
      %s35 = smul.addr %s32, 8
      %s36 = scalar_lea.hbm %s1, %s35
      %s38 = sshll.u32 %s36, 4
      %s39 = int_to_ptr.hbm [resolvable:$true] %s38
      %s40 = sshll.u32 [#allocation5], 4
      %s41 = int_to_ptr.vmem [resolvable:$true] %s40
      %43 = dma.hbm_to_vmem [thread:$0]  %s39, 128, %s41, [#allocation6]
    $region9: #{tpu_custom_call.1} parent=1 // pred_fallthru
      _
    // Predicated region
    $region10: #{tpu_custom_call.1} parent=1 // pred_check
      _
    $region11: #{tpu_custom_call.1} parent=1 // pred_check_branch
      %45 = sbr.rel (0) target = $region13
    $region12: #{tpu_custom_call.1} parent=1 // pred_region
      %s46 = sadd.s32 0, 0
      %48 = vsyncadd [#allocation6], 0
      %s49 = smul.addr %s46, 8
      %s50 = scalar_lea.hbm %s2, %s49
      %s52 = sshll.u32 %s50, 4
      %s53 = int_to_ptr.hbm [resolvable:$true] %s52
      %s54 = sshll.u32 [#allocation7], 4
      %s55 = int_to_ptr.vmem [resolvable:$true] %s54
      %57 = dma.hbm_to_vmem [thread:$0]  %s53, 128, %s55, [#allocation6]
    $region13: #{tpu_custom_call.1} parent=1 // pred_fallthru
      _
    // Predicated region
    $region14: #{tpu_custom_call.1} parent=1 // pred_check
      _
    $region15: #{tpu_custom_call.1} parent=1 // pred_check_branch
      %59 = sbr.rel (0) target = $region17
    $region16: #{tpu_custom_call.1} parent=1 // pred_region
      %61 = vsyncadd [#allocation9], 0
      %s62 = sshll.u32 %s3, 4
      %s63 = int_to_ptr.hbm [resolvable:$true] %s62
      %s64 = sshll.u32 [#allocation8], 4
      %s65 = int_to_ptr.vmem [resolvable:$true] %s64
      %70 = dma.hbm_to_vmem [thread:$0]  %s63, 512, %s65, [#allocation9], 128, 128, 8
    $region17: #{tpu_custom_call.1} parent=1 // pred_fallthru
      _
    // Predicated region
    $region18: #{tpu_custom_call.1} parent=1 // pred_check
      _
    $region19: #{tpu_custom_call.1} parent=1 // pred_check_branch
      %72 = sbr.rel (0) target = $region21
    $region20: #{tpu_custom_call.1} parent=1 // pred_region
      _
    $region21: #{tpu_custom_call.1} parent=1 // pred_fallthru
      _
    // Predicated region
    $region22: #{tpu_custom_call.1} parent=1 // pred_check
      _
    $region23: #{tpu_custom_call.1} parent=1 // pred_check_branch
      %74 = sbr.rel (0) target = $region25
    $region24: #{tpu_custom_call.1} parent=1 // pred_region
      %76 = vsyncadd [#allocation9], 0
      %s77 = sshll.u32 %s5, 4
      %s78 = int_to_ptr.hbm [resolvable:$true] %s77
      %s79 = sshll.u32 [#allocation10], 4
      %s80 = int_to_ptr.vmem [resolvable:$true] %s79
      %85 = dma.hbm_to_vmem [thread:$0]  %s78, 1024, %s80, [#allocation9], 256, 256, 16
    $region25: #{tpu_custom_call.1} parent=1 // pred_fallthru
      _
    // Predicated region
    $region26: #{tpu_custom_call.1} parent=1 // pred_check
      _
    $region27: #{tpu_custom_call.1} parent=1 // pred_check_branch
      %87 = sbr.rel (0) target = $region29
    $region28: #{tpu_custom_call.1} parent=1 // pred_region
      _
    $region29: #{tpu_custom_call.1} parent=1 // pred_fallthru
      _
    // Predicated region
    $region30: #{tpu_custom_call.1} parent=1 // pred_check
      _
    $region31: #{tpu_custom_call.1} parent=1 // pred_check_branch
      %89 = sbr.rel (0) target = $region33
    $region32: #{tpu_custom_call.1} parent=1 // pred_region
      %91 = dma.done [#allocation3], 128
    $region33: #{tpu_custom_call.1} parent=1 // pred_fallthru
      _
    // Predicated region
    $region34: #{tpu_custom_call.1} parent=1 // pred_check
      _
    $region35: #{tpu_custom_call.1} parent=1 // pred_check_branch
      %93 = sbr.rel (0) target = $region37
    $region36: #{tpu_custom_call.1} parent=1 // pred_region
      %95 = dma.done [#allocation6], 128
    $region37: #{tpu_custom_call.1} parent=1 // pred_fallthru
      _
    // Predicated region
    $region38: #{tpu_custom_call.1} parent=1 // pred_check
      _
    $region39: #{tpu_custom_call.1} parent=1 // pred_check_branch
      %97 = sbr.rel (0) target = $region41
    $region40: #{tpu_custom_call.1} parent=1 // pred_region
      %99 = dma.done [#allocation6], 128
    $region41: #{tpu_custom_call.1} parent=1 // pred_fallthru
      _
    // Predicated region
    $region42: #{tpu_custom_call.1} parent=1 // pred_check
      _
    $region43: #{tpu_custom_call.1} parent=1 // pred_check_branch
      %101 = sbr.rel (0) target = $region45
    $region44: #{tpu_custom_call.1} parent=1 // pred_region
      %103 = dma.done [#allocation9], 512
    $region45: #{tpu_custom_call.1} parent=1 // pred_fallthru
      _
    // Predicated region
    $region46: #{tpu_custom_call.1} parent=1 // pred_check
      _
    $region47: #{tpu_custom_call.1} parent=1 // pred_check_branch
      %105 = sbr.rel (0) target = $region49
    $region48: #{tpu_custom_call.1} parent=1 // pred_region
      %107 = dma.done [#allocation9], 1024
    $region49: #{tpu_custom_call.1} parent=1 // pred_fallthru
      _
    %s108 = sadd.s32 0, 0
    %s109 = sadd.s32 0, 0
    %s110 = sadd.s32 0, 0
    %p111 = scmp.eq.s32.totalorder 0, 0
    // Predicated region
    $region50: #{tpu_custom_call.1} parent=1 // pred_check
      %p112 = pneg %p111
    $region51: #{tpu_custom_call.1} parent=1 // pred_check_branch
      %114 = sbr.rel (%p112) target = $region53
    $region52: #{tpu_custom_call.1} parent=1 // pred_region
      %vm115 = vcmask 122880
      %116 = vst.msk [vmem:[#allocation11] sm:$0x1] %vm115, 0.0
    $region53: #{tpu_custom_call.1} parent=1 // pred_fallthru
      _
    %v117 = vld [vmem:[#allocation2] sm:$0xff]
    %v118 = vld [vmem:[#allocation8] sm:$0xff]
    %v119 = vld [vmem:[#allocation8 + $0x8] sm:$0xff]
    %v120 = vld [vmem:[#allocation8 + $0x10] sm:$0xff]
    %v121 = vld [vmem:[#allocation8 + $0x18] sm:$0xff]
    %v122 = vld [vmem:[%s4] sm:$0x1]
    %v124 = vperm.slane %v122, 0
    %vm126 = vcmask 261120
    %v128 = vsel %vm126, %v117, 0
    %130 = vmatpush.msra.mxu0 0.0
    %131 = vmatpush.msra.mxu0 0.0
    %132 = vmatpush.msra.mxu0 0.0
    %133 = vmatpush.msra.mxu0 0.0
    %134 = vmatpush.msra.mxu0 0.0
    %135 = vmatpush.msra.mxu0 0.0
    %136 = vmatpush.msra.mxu0 0.0
    %137 = vmatpush.msra.mxu0 0.0
    %138 = vmatpush.msra.mxu0 0.0
    %139 = vmatpush.msra.mxu0 0.0
    %140 = vmatpush.msra.mxu0 0.0
    %141 = vmatpush.msra.mxu0 0.0
    %142 = vmatpush.msra.mxu0 %v121
    %143 = vmatpush.msra.mxu0 %v120
    %144 = vmatpush.msra.mxu0 %v119
    %145 = vmatpush.msra.mxu0 %v118
    %146 = vmatmul.f32.gmra.mxu0 %v128
    %v147 = vpop.f32.mrf.mxu0
    %v148 = vadd.f32 %v124, %v147
    %149 = vdwg.mxu0
    %v150 = vmax.f32 %v148, 0.0
    %v151 = vld [vmem:[#allocation10] sm:$0xff]
    %v152 = vld [vmem:[#allocation10 + $0x8] sm:$0xff]
    %v153 = vld [vmem:[#allocation10 + $0x10] sm:$0xff]
    %v154 = vld [vmem:[#allocation10 + $0x18] sm:$0xff]
    %v155 = vld [vmem:[#allocation10 + $0x20] sm:$0xff]
    %v156 = vld [vmem:[#allocation10 + $0x28] sm:$0xff]
    %v157 = vld [vmem:[#allocation10 + $0x30] sm:$0xff]
    %v158 = vld [vmem:[#allocation10 + $0x38] sm:$0xff]
    %v159 = vld [vmem:[%s6] sm:$0x3]
    %v161 = vperm.slane %v159, 0
    %v162 = vperm.slane %v159, 1
    %v166 = vsel %vm126, %v150, 0
    %168 = vmatpush.msra.mxu0 0.0
    %169 = vmatpush.msra.mxu0 0.0
    %170 = vmatpush.msra.mxu0 0.0
    %171 = vmatpush.msra.mxu0 0.0
    %172 = vmatpush.msra.mxu0 0.0
    %173 = vmatpush.msra.mxu0 0.0
    %174 = vmatpush.msra.mxu0 0.0
    %175 = vmatpush.msra.mxu0 0.0
    %176 = vmatpush.msra.mxu0 0.0
    %177 = vmatpush.msra.mxu0 0.0
    %178 = vmatpush.msra.mxu0 0.0
    %179 = vmatpush.msra.mxu0 0.0
    %180 = vmatpush.msra.mxu0 %v157
    %181 = vmatpush.msra.mxu0 %v155
    %182 = vmatpush.msra.mxu0 %v153
    %183 = vmatpush.msra.mxu0 %v151
    %184 = vmatmul.f32.gmra.mxu0 %v166
    %v185 = vpop.f32.mrf.mxu0
    %v186 = vadd.f32 %v161, %v185
    %187 = vdwg.mxu0
    %188 = vmatpush.msra.mxu0 0.0
    %189 = vmatpush.msra.mxu0 0.0
    %190 = vmatpush.msra.mxu0 0.0
    %191 = vmatpush.msra.mxu0 0.0
    %192 = vmatpush.msra.mxu0 0.0
    %193 = vmatpush.msra.mxu0 0.0
    %194 = vmatpush.msra.mxu0 0.0
    %195 = vmatpush.msra.mxu0 0.0
    %196 = vmatpush.msra.mxu0 0.0
    %197 = vmatpush.msra.mxu0 0.0
    %198 = vmatpush.msra.mxu0 0.0
    %199 = vmatpush.msra.mxu0 0.0
    %200 = vmatpush.msra.mxu0 %v158
    %201 = vmatpush.msra.mxu0 %v156
    %202 = vmatpush.msra.mxu0 %v154
    %203 = vmatpush.msra.mxu0 %v152
    %204 = vmatmul.f32.gmra.mxu0 %v166
    %v205 = vpop.f32.mrf.mxu0
    %v206 = vadd.f32 %v162, %v205
    %207 = vdwg.mxu0
    %v208 = vtanh.pop %v206
    %v209 = vsub.f32 0.0, %v208
    %v210 = vmul.f32 %v209, 1.442695
    %v211 = vpow.pop %v210
    %v212 = vld [vmem:[#allocation5] sm:$0xff]
    %v213 = vld [vmem:[#allocation7] sm:$0xff]
    %v214 = vsub.f32 %v212, %v213
    %v215 = vmul.f32 %v186, 2.0
    %v216 = vsub.f32 %v215, %v212
    %v217 = vsub.f32 %v216, %v213
    %v218 = vmul.f32 %v214, %v217
    %v219 = vmul.f32 %v218, %v211
    %v220 = vld [vmem:[#allocation11] sm:$0x1]
    %vm221 = vcmask 130048
    %v222 = vsel %vm221, %v219, 0.0
    %v223 = vrot.slane %v222, 4
    %v224 = vadd.f32 %v222, %v223
    %v225 = vrot.slane %v224, 2
    %v226 = vadd.f32 %v224, %v225
    %v227 = vrot.slane %v226, 1
    %v228 = vadd.f32 %v226, %v227
    %v229 = vadd.f32 %v220, %v228
    %vm230 = vcmask 122880
    %231 = vst.msk [vmem:[#allocation11] sm:$0x1] %vm230, %v229
    // Predicated region
    $region54: #{tpu_custom_call.1} parent=1 // pred_check
      _
    $region55: #{tpu_custom_call.1} parent=1 // pred_check_branch
      %233 = sbr.rel (0) target = $region57
    $region56: #{tpu_custom_call.1} parent=1 // pred_region
      %235 = vsyncadd [#allocation4], 0
      %s237 = sshll.u32 [#allocation11], 4
      %s238 = int_to_ptr.vmem [resolvable:$true] %s237
      %s239 = sshll.u32 %s7, 4
      %s240 = int_to_ptr.hbm [resolvable:$true] %s239
      %242 = dma.vmem_to_hbm [thread:$0]  %s238, 16, %s240, [#allocation4]
    $region57: #{tpu_custom_call.1} parent=1 // pred_fallthru
      _
    // Predicated region
    $region58: #{tpu_custom_call.1} parent=1 // pred_check
      _
    $region59: #{tpu_custom_call.1} parent=1 // pred_check_branch
      %244 = sbr.rel (0) target = $region61
    $region60: #{tpu_custom_call.1} parent=1 // pred_region
      %246 = dma.done [#allocation4], 16
    $region61: #{tpu_custom_call.1} parent=1 // pred_fallthru
      _
    %247 = vsyncpa [#allocation3], 1
    %248 = vsyncpa [#allocation6], 1
    %249 = vsyncpa [#allocation9], 1
    %250 = vsyncpa [#allocation4], 1

</llo_original>
